<compile_context>
chip_gen: v6e
topology: v6e:2x2x1
jax: 0.10.0
libtpu: 0.0.40
codegen_flags: <defaults>
</compile_context>

<pallas_src>
import functools
import math

import numpy as np

import jax
import jax.numpy as jnp
from jax import lax
from jax.experimental import pallas as pl
from jax.experimental.pallas import tpu as pltpu

# numpy scalars (NOT jnp arrays) so they inline as jaxpr literals instead of being
# captured as constants by the kernel trace.
_FMIX_C1 = np.uint32(0x85EBCA6B)
_FMIX_C2 = np.uint32(0xC2B2AE35)
_EXP_ONE = np.uint32(0x3F800000)
_SEED_MIX = np.int32(1000000007)


def _fmix32(h):
    """murmur3 finalizer: good avalanche; used once per element (not per iteration)."""
    h = h ^ (h >> 16)
    h = h * _FMIX_C1
    h = h ^ (h >> 13)
    h = h * _FMIX_C2
    h = h ^ (h >> 16)
    return h


def _op_plus_poisson_kernel(seed_ref, x_ref, mask_ref, o_ref, *,
                            W, scale_factor, max_iters, chunk, unroll):
    TB, L = x_ref.shape                  # TB planes, each flattened to L = H*W (lane-dense)
    n_chunks = TB // chunk
    sf = np.float32(scale_factor)
    inv_sf = np.float32(1.0 / scale_factor)

    # Horizontal-edge masks, broadcast once to chunk height (hoisted out of the loop).
    lmask = jnp.broadcast_to(mask_ref[0:1, :], (chunk, L))   # left  neighbor exists
    rmask = jnp.broadcast_to(mask_ref[1:2, :], (chunk, L))   # right neighbor exists

    # Per-element flat offset within a chunk (hoisted); per-chunk only a scalar is added.
    row = lax.broadcasted_iota(jnp.int32, (chunk, L), 0)
    pos = lax.broadcasted_iota(jnp.int32, (chunk, L), 1)
    rowpos = row * np.int32(L) + pos
    seed_mix = seed_ref[0] * _SEED_MIX
    block_plane0 = pl.program_id(0) * np.int32(TB)

    def shift(a, d):
        # shift(a, d)[:, n] = a[:, n + d], zero-filled at the ends of the flat axis.
        if d == 0:
            return a
        z = jnp.zeros((chunk, abs(d)), jnp.float32)
        if d > 0:
            return jnp.concatenate([a[:, d:], z], axis=1)
        return jnp.concatenate([z, a[:, :L + d]], axis=1)

    def chunk_body(c, carry):
        off = pl.multiple_of(c * chunk, chunk)

        # ---- clamp(x, 0, 1) -------------------------------------------------
        x = jnp.clip(x_ref[pl.ds(off, chunk), :], 0.0, 1.0)

        # ---- internal operator: separable 3x3 Gaussian blur, zero 'same' pad --
        # Vertical (1,2,1)/4: +-W flat shifts are exact row shifts; zero fill handles
        # the top/bottom rows. Horizontal (1,2,1)/4: +-1 shifts wrap across row
        # boundaries, so mask first/last columns.
        v = (shift(x, -W) + 2.0 * x + shift(x, W)) * 0.25
        blur = (lmask * shift(v, -1) + 2.0 * v + rmask * shift(v, 1)) * 0.25

        lam = blur * sf                    # Poisson rate, 0 <= lam <= scale_factor
        thresh = jnp.exp(-lam)             # single EUP pass; sampling loop is VALU-only

        # ---- per-element RNG state: fmix32 on a unique counter, then xorshift32 ----
        base = rowpos + (block_plane0 + off) * np.int32(L) + seed_mix
        state0 = _fmix32(lax.bitcast_convert_type(base, jnp.uint32)) | np.uint32(1)

        prod0 = jnp.ones((chunk, L), jnp.float32)
        cnt0 = jnp.zeros((chunk, L), jnp.float32)

        # ---- Poisson sampling: Knuth product-of-uniforms with early exit ------
        # k = #{ j : prod_{i<=j} u_i > exp(-lam) }, u_i ~ U(0,1]. Extra iterations
        # never change cnt (prod only shrinks), so running unroll-sized blocks is safe.
        # TODO(synk): very large scale_factor (lam >> 80) would need a normal-approx branch.
        def cond(carry_w):
            prod, _, _, it = carry_w
            active = jnp.max(jnp.where(prod > thresh, 1.0, 0.0))
            return jnp.logical_and(it < max_iters, active > 0.0)

        def body(carry_w):
            prod, cnt, st, it = carry_w
            for _ in range(unroll):
                # xorshift32: no 32-bit integer multiplies in the hot loop.
                st = st ^ (st << 13)
                st = st ^ (st >> 17)
                st = st ^ (st << 5)
                fbits = (st >> 9) | _EXP_ONE                       # float bits in [1, 2)
                u = 2.0 - lax.bitcast_convert_type(fbits, jnp.float32)  # u in (0, 1]
                prod = prod * u
                cnt = cnt + jnp.where(prod > thresh, 1.0, 0.0)
            return prod, cnt, st, it + unroll

        _, cnt, _, _ = lax.while_loop(cond, body,
                                      (prod0, cnt0, state0, jnp.int32(0)))

        # ---- rescale back and store (lane-dense, unmasked stores) -------------
        o_ref[pl.ds(off, chunk), :] = cnt * inv_sf
        return carry

    lax.fori_loop(0, n_chunks, chunk_body, 0)


def operator_plus_poisson_noise(x, seed, scale_factor=8.0):
    """x: (B, C, H, W) float32 (NCHW). Returns (B, C, H, W) float32."""
    B, C, H, W = x.shape
    P, L = B * C, H * W
    xf = jnp.asarray(x, jnp.float32).reshape(P, L)

    # Planes per grid step: large (amortizes ~0.35 us/step overhead), sublane-aligned.
    # The inner chunk loop keeps vreg pressure independent of TB. Double-buffered
    # in+out at TB=256, L=256 is ~1 MiB -> far below the 32 MiB scoped limit on all of
    # v5e/v6e/v7x (v7x physical VMEM is 64 MiB).
    TB = min(256, ((P + 7) // 8) * 8)
    chunk = 16 if TB % 16 == 0 else 8
    P_pad = ((P + TB - 1) // TB) * TB
    if P_pad != P:
        xf = jnp.pad(xf, ((0, P_pad - P), (0, 0)))  # zero planes -> early-exit, count 0

    # Horizontal-edge masks for the separable blur (host-side numpy constants).
    col = np.arange(L, dtype=np.int64) % W
    masks = jnp.asarray(np.stack([(col >= 1), (col <= W - 2)]).astype(np.float32))  # (2, L)

    # Truncation depth from the rate: lam <= scale_factor (blur(x) <= 1); early exit
    # usually terminates the block well before this cap.
    max_iters = int(min(80, max(8, math.ceil(scale_factor + 10.0 * math.sqrt(scale_factor)))))

    seed_arr = jnp.asarray([seed], dtype=jnp.int32)

    kernel = functools.partial(
        _op_plus_poisson_kernel,
        W=int(W), scale_factor=float(scale_factor),
        max_iters=max_iters, chunk=chunk, unroll=8)

    out = pl.pallas_call(
        kernel,
        out_shape=jax.ShapeDtypeStruct((P_pad, L), jnp.float32),
        grid_spec=pltpu.PrefetchScalarGridSpec(
            num_scalar_prefetch=1,                      # seed lands in SMEM
            grid=(P_pad // TB,),
            in_specs=[pl.BlockSpec((TB, L), lambda i, s: (i, 0)),
                      pl.BlockSpec((2, L), lambda i, s: (0, 0))],
            out_specs=pl.BlockSpec((TB, L), lambda i, s: (i, 0)),
        ),
        compiler_params=pltpu.CompilerParams(
            # TODO(synk): on v7x, verify in xprof that this shards across both
            # TensorCores; if not, switch to a leading CORE_PARALLEL axis of size 2.
            dimension_semantics=("parallel",),
            vmem_limit_bytes=32 * 1024 * 1024,          # safe on v5e/v6e/v7x
        ),
    )(seed_arr, xf, masks)

    return out[:P].reshape(B, C, H, W)


if __name__ == "__main__":
    key = jax.random.PRNGKey(0)
    B, C, H, W = 2, 4, 16, 16
    x = jax.random.uniform(key, (B, C, H, W), dtype=jnp.float32,
                           minval=-0.2, maxval=1.2)  # exercise the clamp

    scale_factor = 8.0
    y = operator_plus_poisson_noise(x, seed=1234, scale_factor=scale_factor)
    y = jax.block_until_ready(y)

    # Sanity: correct shape/dtype, non-negative, finite, quantized to 1/scale_factor,
    # and mean roughly matches the (clamped, blurred) signal mean.
    assert y.shape == (B, C, H, W) and y.dtype == jnp.float32
    assert bool(jnp.all(y >= 0.0))
    assert bool(jnp.all(jnp.isfinite(y)))
    q = y * scale_factor
    assert bool(jnp.allclose(q, jnp.round(q), atol=1e-4))  # Poisson counts are integers
    mean_ref = float(jnp.mean(jnp.clip(x, 0.0, 1.0)))
    mean_out = float(jnp.mean(y))
    assert abs(mean_out - mean_ref) < 0.15, (mean_out, mean_ref)

    print("KERNEL_OK")
</pallas_src>

<mosaic_0001>
module attributes {stable_mosaic.version = 11 : i64} {
  func.func @_op_plus_poisson_kernel(%arg0: i32, %arg1: memref<1xi32, #tpu.memory_space<smem>>, %arg2: memref<8x256xf32, #tpu.memory_space<vmem>>, %arg3: memref<2x256xf32, #tpu.memory_space<vmem>>, %arg4: memref<8x256xf32, #tpu.memory_space<vmem>>) attributes {dimension_semantics = [#tpu.dimension_semantics<parallel>], iteration_bounds = array<i64: 1>, scalar_prefetch = 1 : i64, scratch_operands = 0 : i64, tpu.core_type = #tpu.core_type<tc>, window_params = [{transform_indices = @transform_0, window_bounds = array<i64: 8, 256>}, {pipeline_mode = #tpu.pipeline_mode<synchronous>, transform_indices = @transform_1, window_bounds = array<i64: 2, 256>}, {transform_indices = @transform_2, window_bounds = array<i64: 8, 256>}]} {
    %c0 = arith.constant 0 : index
    %c0_0 = arith.constant 0 : index
    %0 = vector.load %arg3[%c0, %c0_0] : memref<2x256xf32, #tpu.memory_space<vmem>>, vector<1x256xf32>
    %1 = vector.shape_cast %0 : vector<1x256xf32> to vector<1x256xf32>
    %2 = vector.broadcast %1 : vector<1x256xf32> to vector<8x256xf32>
    %c1 = arith.constant 1 : index
    %c0_1 = arith.constant 0 : index
    %3 = vector.load %arg3[%c1, %c0_1] : memref<2x256xf32, #tpu.memory_space<vmem>>, vector<1x256xf32>
    %4 = vector.shape_cast %3 : vector<1x256xf32> to vector<1x256xf32>
    %5 = vector.broadcast %4 : vector<1x256xf32> to vector<8x256xf32>
    %6 = tpu.iota {dimensions = array<i32: 0>} : vector<8x256xi32>
    %7 = tpu.iota {dimensions = array<i32: 1>} : vector<8x256xi32>
    %c256_i32 = arith.constant 256 : i32
    %8 = vector.broadcast %c256_i32 : i32 to vector<8x256xi32>
    %9 = arith.muli %6, %8 : vector<8x256xi32>
    %10 = arith.addi %9, %7 : vector<8x256xi32>
    %c0_2 = arith.constant 0 : index
    %11 = memref.load %arg1[%c0_2] : memref<1xi32, #tpu.memory_space<smem>>
    %c1000000007_i32 = arith.constant 1000000007 : i32
    %12 = arith.muli %11, %c1000000007_i32 : i32
    %c8_i32 = arith.constant 8 : i32
    %13 = arith.muli %arg0, %c8_i32 : i32
    %c0_i32 = arith.constant 0 : i32
    %c8_i32_3 = arith.constant 8 : i32
    %14 = arith.muli %c0_i32, %c8_i32_3 : i32
    %15 = tpu.assume_multiple %14, 8 : i32
    %16 = arith.index_cast %15 : i32 to index
    %c0_4 = arith.constant 0 : index
    %17 = vector.load %arg2[%16, %c0_4] : memref<8x256xf32, #tpu.memory_space<vmem>>, vector<8x256xf32>
    %cst = arith.constant 0.000000e+00 : f32
    %cst_5 = arith.constant 1.000000e+00 : f32
    %18 = vector.broadcast %cst : f32 to vector<8x256xf32>
    %19 = arith.maximumf %18, %17 : vector<8x256xf32>
    %20 = vector.broadcast %cst_5 : f32 to vector<8x256xf32>
    %21 = arith.minimumf %20, %19 : vector<8x256xf32>
    %cst_6 = arith.constant 0.000000e+00 : f32
    %22 = vector.broadcast %cst_6 : f32 to vector<8x16xf32>
    %23 = vector.extract_strided_slice %21 {offsets = [0, 0], sizes = [8, 240], strides = [1, 1]} : vector<8x256xf32> to vector<8x240xf32>
    %24 = tpu.concatenate %22, %23 in 1 : vector<8x16xf32>, vector<8x240xf32> -> vector<8x256xf32>
    %cst_7 = arith.constant 2.000000e+00 : f32
    %25 = vector.broadcast %cst_7 : f32 to vector<8x256xf32>
    %26 = arith.mulf %25, %21 : vector<8x256xf32>
    %27 = arith.addf %24, %26 : vector<8x256xf32>
    %cst_8 = arith.constant 0.000000e+00 : f32
    %28 = vector.broadcast %cst_8 : f32 to vector<8x16xf32>
    %29 = vector.extract_strided_slice %21 {offsets = [0, 16], sizes = [8, 240], strides = [1, 1]} : vector<8x256xf32> to vector<8x240xf32>
    %30 = tpu.concatenate %29, %28 in 1 : vector<8x240xf32>, vector<8x16xf32> -> vector<8x256xf32>
    %31 = arith.addf %27, %30 : vector<8x256xf32>
    %cst_9 = arith.constant 2.500000e-01 : f32
    %32 = vector.broadcast %cst_9 : f32 to vector<8x256xf32>
    %33 = arith.mulf %31, %32 : vector<8x256xf32>
    %cst_10 = arith.constant 0.000000e+00 : f32
    %34 = vector.broadcast %cst_10 : f32 to vector<8x1xf32>
    %35 = vector.extract_strided_slice %33 {offsets = [0, 0], sizes = [8, 255], strides = [1, 1]} : vector<8x256xf32> to vector<8x255xf32>
    %36 = tpu.concatenate %34, %35 in 1 : vector<8x1xf32>, vector<8x255xf32> -> vector<8x256xf32>
    %37 = arith.mulf %2, %36 : vector<8x256xf32>
    %cst_11 = arith.constant 2.000000e+00 : f32
    %38 = vector.broadcast %cst_11 : f32 to vector<8x256xf32>
    %39 = arith.mulf %38, %33 : vector<8x256xf32>
    %40 = arith.addf %37, %39 : vector<8x256xf32>
    %cst_12 = arith.constant 0.000000e+00 : f32
    %41 = vector.broadcast %cst_12 : f32 to vector<8x1xf32>
    %42 = vector.extract_strided_slice %33 {offsets = [0, 1], sizes = [8, 255], strides = [1, 1]} : vector<8x256xf32> to vector<8x255xf32>
    %43 = tpu.concatenate %42, %41 in 1 : vector<8x255xf32>, vector<8x1xf32> -> vector<8x256xf32>
    %44 = arith.mulf %5, %43 : vector<8x256xf32>
    %45 = arith.addf %40, %44 : vector<8x256xf32>
    %cst_13 = arith.constant 2.500000e-01 : f32
    %46 = vector.broadcast %cst_13 : f32 to vector<8x256xf32>
    %47 = arith.mulf %45, %46 : vector<8x256xf32>
    %cst_14 = arith.constant 8.000000e+00 : f32
    %48 = vector.broadcast %cst_14 : f32 to vector<8x256xf32>
    %49 = arith.mulf %47, %48 : vector<8x256xf32>
    %cst_15 = arith.constant 0.000000e+00 : f32
    %50 = vector.broadcast %cst_15 : f32 to vector<8x256xf32>
    %51 = arith.subf %50, %49 : vector<8x256xf32>
    %52 = math.exp %51 : vector<8x256xf32>
    %53 = arith.addi %13, %15 : i32
    %c256_i32_16 = arith.constant 256 : i32
    %54 = arith.muli %53, %c256_i32_16 : i32
    %55 = vector.broadcast %54 : i32 to vector<8x256xi32>
    %56 = arith.addi %10, %55 : vector<8x256xi32>
    %57 = vector.broadcast %12 : i32 to vector<8x256xi32>
    %58 = arith.addi %56, %57 : vector<8x256xi32>
    %59 = tpu.bitcast %58 : vector<8x256xi32> -> vector<8x256xi32>
    %c16_i32 = arith.constant 16 : i32
    %60 = vector.broadcast %c16_i32 : i32 to vector<8x256xi32>
    %61 = arith.shrui %59, %60 : vector<8x256xi32>
    %62 = arith.xori %59, %61 : vector<8x256xi32>
    %c-2048144789_i32 = arith.constant -2048144789 : i32
    %63 = vector.broadcast %c-2048144789_i32 : i32 to vector<8x256xi32>
    %64 = arith.muli %62, %63 : vector<8x256xi32>
    %c13_i32 = arith.constant 13 : i32
    %65 = vector.broadcast %c13_i32 : i32 to vector<8x256xi32>
    %66 = arith.shrui %64, %65 : vector<8x256xi32>
    %67 = arith.xori %64, %66 : vector<8x256xi32>
    %c-1028477387_i32 = arith.constant -1028477387 : i32
    %68 = vector.broadcast %c-1028477387_i32 : i32 to vector<8x256xi32>
    %69 = arith.muli %67, %68 : vector<8x256xi32>
    %c16_i32_17 = arith.constant 16 : i32
    %70 = vector.broadcast %c16_i32_17 : i32 to vector<8x256xi32>
    %71 = arith.shrui %69, %70 : vector<8x256xi32>
    %72 = arith.xori %69, %71 : vector<8x256xi32>
    %c1_i32 = arith.constant 1 : i32
    %73 = vector.broadcast %c1_i32 : i32 to vector<8x256xi32>
    %74 = arith.ori %72, %73 : vector<8x256xi32>
    %cst_18 = arith.constant 1.000000e+00 : f32
    %75 = vector.broadcast %cst_18 : f32 to vector<8x256xf32>
    %cst_19 = arith.constant 0.000000e+00 : f32
    %76 = vector.broadcast %cst_19 : f32 to vector<8x256xf32>
    %c0_i32_20 = arith.constant 0 : i32
    %77:4 = scf.while (%arg5 = %75, %arg6 = %76, %arg7 = %74, %arg8 = %c0_i32_20) : (vector<8x256xf32>, vector<8x256xf32>, vector<8x256xi32>, i32) -> (vector<8x256xf32>, vector<8x256xf32>, vector<8x256xi32>, i32) {
      %82 = arith.cmpf ogt, %arg5, %52 : vector<8x256xf32>
      %cst_24 = arith.constant 1.000000e+00 : f32
      %cst_25 = arith.constant 0.000000e+00 : f32
      %83 = vector.broadcast %cst_24 : f32 to vector<8x256xf32>
      %84 = vector.broadcast %cst_25 : f32 to vector<8x256xf32>
      %85 = arith.select %82, %83, %84 : vector<8x256xi1>, vector<8x256xf32>
      %86 = vector.shape_cast %85 : vector<8x256xf32> to vector<1x8x256xf32>
      %cst_26 = arith.constant dense<0xFF800000> : vector<1xf32>
      %87 = vector.multi_reduction <maximumf>, %86, %cst_26 [1, 2] : vector<1x8x256xf32> to vector<1xf32>
      %88 = vector.shape_cast %87 : vector<1xf32> to vector<1x1x1xf32>
      %89 = vector.extract %88[0, 0, 0] : f32 from vector<1x1x1xf32>
      %c37_i32 = arith.constant 37 : i32
      %90 = arith.cmpi slt, %arg8, %c37_i32 : i32
      %cst_27 = arith.constant 0.000000e+00 : f32
      %91 = arith.cmpf ogt, %89, %cst_27 : f32
      %92 = arith.andi %90, %91 : i1
      scf.condition(%92) %arg5, %arg6, %arg7, %arg8 : vector<8x256xf32>, vector<8x256xf32>, vector<8x256xi32>, i32
    } do {
    ^bb0(%arg5: vector<8x256xf32>, %arg6: vector<8x256xf32>, %arg7: vector<8x256xi32>, %arg8: i32):
      %c13_i32_24 = arith.constant 13 : i32
      %82 = vector.broadcast %c13_i32_24 : i32 to vector<8x256xi32>
      %83 = arith.shli %arg7, %82 : vector<8x256xi32>
      %84 = arith.xori %arg7, %83 : vector<8x256xi32>
      %c17_i32 = arith.constant 17 : i32
      %85 = vector.broadcast %c17_i32 : i32 to vector<8x256xi32>
      %86 = arith.shrui %84, %85 : vector<8x256xi32>
      %87 = arith.xori %84, %86 : vector<8x256xi32>
      %c5_i32 = arith.constant 5 : i32
      %88 = vector.broadcast %c5_i32 : i32 to vector<8x256xi32>
      %89 = arith.shli %87, %88 : vector<8x256xi32>
      %90 = arith.xori %87, %89 : vector<8x256xi32>
      %c9_i32 = arith.constant 9 : i32
      %91 = vector.broadcast %c9_i32 : i32 to vector<8x256xi32>
      %92 = arith.shrui %90, %91 : vector<8x256xi32>
      %c1065353216_i32 = arith.constant 1065353216 : i32
      %93 = vector.broadcast %c1065353216_i32 : i32 to vector<8x256xi32>
      %94 = arith.ori %92, %93 : vector<8x256xi32>
      %95 = tpu.bitcast %94 : vector<8x256xi32> -> vector<8x256xf32>
      %cst_25 = arith.constant 2.000000e+00 : f32
      %96 = vector.broadcast %cst_25 : f32 to vector<8x256xf32>
      %97 = arith.subf %96, %95 : vector<8x256xf32>
      %98 = arith.mulf %arg5, %97 : vector<8x256xf32>
      %99 = arith.cmpf ogt, %98, %52 : vector<8x256xf32>
      %cst_26 = arith.constant 1.000000e+00 : f32
      %cst_27 = arith.constant 0.000000e+00 : f32
      %100 = vector.broadcast %cst_26 : f32 to vector<8x256xf32>
      %101 = vector.broadcast %cst_27 : f32 to vector<8x256xf32>
      %102 = arith.select %99, %100, %101 : vector<8x256xi1>, vector<8x256xf32>
      %103 = arith.addf %arg6, %102 : vector<8x256xf32>
      %c13_i32_28 = arith.constant 13 : i32
      %104 = vector.broadcast %c13_i32_28 : i32 to vector<8x256xi32>
      %105 = arith.shli %90, %104 : vector<8x256xi32>
      %106 = arith.xori %90, %105 : vector<8x256xi32>
      %c17_i32_29 = arith.constant 17 : i32
      %107 = vector.broadcast %c17_i32_29 : i32 to vector<8x256xi32>
      %108 = arith.shrui %106, %107 : vector<8x256xi32>
      %109 = arith.xori %106, %108 : vector<8x256xi32>
      %c5_i32_30 = arith.constant 5 : i32
      %110 = vector.broadcast %c5_i32_30 : i32 to vector<8x256xi32>
      %111 = arith.shli %109, %110 : vector<8x256xi32>
      %112 = arith.xori %109, %111 : vector<8x256xi32>
      %c9_i32_31 = arith.constant 9 : i32
      %113 = vector.broadcast %c9_i32_31 : i32 to vector<8x256xi32>
      %114 = arith.shrui %112, %113 : vector<8x256xi32>
      %c1065353216_i32_32 = arith.constant 1065353216 : i32
      %115 = vector.broadcast %c1065353216_i32_32 : i32 to vector<8x256xi32>
      %116 = arith.ori %114, %115 : vector<8x256xi32>
      %117 = tpu.bitcast %116 : vector<8x256xi32> -> vector<8x256xf32>
      %cst_33 = arith.constant 2.000000e+00 : f32
      %118 = vector.broadcast %cst_33 : f32 to vector<8x256xf32>
      %119 = arith.subf %118, %117 : vector<8x256xf32>
      %120 = arith.mulf %98, %119 : vector<8x256xf32>
      %121 = arith.cmpf ogt, %120, %52 : vector<8x256xf32>
      %cst_34 = arith.constant 1.000000e+00 : f32
      %cst_35 = arith.constant 0.000000e+00 : f32
      %122 = vector.broadcast %cst_34 : f32 to vector<8x256xf32>
      %123 = vector.broadcast %cst_35 : f32 to vector<8x256xf32>
      %124 = arith.select %121, %122, %123 : vector<8x256xi1>, vector<8x256xf32>
      %125 = arith.addf %103, %124 : vector<8x256xf32>
      %c13_i32_36 = arith.constant 13 : i32
      %126 = vector.broadcast %c13_i32_36 : i32 to vector<8x256xi32>
      %127 = arith.shli %112, %126 : vector<8x256xi32>
      %128 = arith.xori %112, %127 : vector<8x256xi32>
      %c17_i32_37 = arith.constant 17 : i32
      %129 = vector.broadcast %c17_i32_37 : i32 to vector<8x256xi32>
      %130 = arith.shrui %128, %129 : vector<8x256xi32>
      %131 = arith.xori %128, %130 : vector<8x256xi32>
      %c5_i32_38 = arith.constant 5 : i32
      %132 = vector.broadcast %c5_i32_38 : i32 to vector<8x256xi32>
      %133 = arith.shli %131, %132 : vector<8x256xi32>
      %134 = arith.xori %131, %133 : vector<8x256xi32>
      %c9_i32_39 = arith.constant 9 : i32
      %135 = vector.broadcast %c9_i32_39 : i32 to vector<8x256xi32>
      %136 = arith.shrui %134, %135 : vector<8x256xi32>
      %c1065353216_i32_40 = arith.constant 1065353216 : i32
      %137 = vector.broadcast %c1065353216_i32_40 : i32 to vector<8x256xi32>
      %138 = arith.ori %136, %137 : vector<8x256xi32>
      %139 = tpu.bitcast %138 : vector<8x256xi32> -> vector<8x256xf32>
      %cst_41 = arith.constant 2.000000e+00 : f32
      %140 = vector.broadcast %cst_41 : f32 to vector<8x256xf32>
      %141 = arith.subf %140, %139 : vector<8x256xf32>
      %142 = arith.mulf %120, %141 : vector<8x256xf32>
      %143 = arith.cmpf ogt, %142, %52 : vector<8x256xf32>
      %cst_42 = arith.constant 1.000000e+00 : f32
      %cst_43 = arith.constant 0.000000e+00 : f32
      %144 = vector.broadcast %cst_42 : f32 to vector<8x256xf32>
      %145 = vector.broadcast %cst_43 : f32 to vector<8x256xf32>
      %146 = arith.select %143, %144, %145 : vector<8x256xi1>, vector<8x256xf32>
      %147 = arith.addf %125, %146 : vector<8x256xf32>
      %c13_i32_44 = arith.constant 13 : i32
      %148 = vector.broadcast %c13_i32_44 : i32 to vector<8x256xi32>
      %149 = arith.shli %134, %148 : vector<8x256xi32>
      %150 = arith.xori %134, %149 : vector<8x256xi32>
      %c17_i32_45 = arith.constant 17 : i32
      %151 = vector.broadcast %c17_i32_45 : i32 to vector<8x256xi32>
      %152 = arith.shrui %150, %151 : vector<8x256xi32>
      %153 = arith.xori %150, %152 : vector<8x256xi32>
      %c5_i32_46 = arith.constant 5 : i32
      %154 = vector.broadcast %c5_i32_46 : i32 to vector<8x256xi32>
      %155 = arith.shli %153, %154 : vector<8x256xi32>
      %156 = arith.xori %153, %155 : vector<8x256xi32>
      %c9_i32_47 = arith.constant 9 : i32
      %157 = vector.broadcast %c9_i32_47 : i32 to vector<8x256xi32>
      %158 = arith.shrui %156, %157 : vector<8x256xi32>
      %c1065353216_i32_48 = arith.constant 1065353216 : i32
      %159 = vector.broadcast %c1065353216_i32_48 : i32 to vector<8x256xi32>
      %160 = arith.ori %158, %159 : vector<8x256xi32>
      %161 = tpu.bitcast %160 : vector<8x256xi32> -> vector<8x256xf32>
      %cst_49 = arith.constant 2.000000e+00 : f32
      %162 = vector.broadcast %cst_49 : f32 to vector<8x256xf32>
      %163 = arith.subf %162, %161 : vector<8x256xf32>
      %164 = arith.mulf %142, %163 : vector<8x256xf32>
      %165 = arith.cmpf ogt, %164, %52 : vector<8x256xf32>
      %cst_50 = arith.constant 1.000000e+00 : f32
      %cst_51 = arith.constant 0.000000e+00 : f32
      %166 = vector.broadcast %cst_50 : f32 to vector<8x256xf32>
      %167 = vector.broadcast %cst_51 : f32 to vector<8x256xf32>
      %168 = arith.select %165, %166, %167 : vector<8x256xi1>, vector<8x256xf32>
      %169 = arith.addf %147, %168 : vector<8x256xf32>
      %c13_i32_52 = arith.constant 13 : i32
      %170 = vector.broadcast %c13_i32_52 : i32 to vector<8x256xi32>
      %171 = arith.shli %156, %170 : vector<8x256xi32>
      %172 = arith.xori %156, %171 : vector<8x256xi32>
      %c17_i32_53 = arith.constant 17 : i32
      %173 = vector.broadcast %c17_i32_53 : i32 to vector<8x256xi32>
      %174 = arith.shrui %172, %173 : vector<8x256xi32>
      %175 = arith.xori %172, %174 : vector<8x256xi32>
      %c5_i32_54 = arith.constant 5 : i32
      %176 = vector.broadcast %c5_i32_54 : i32 to vector<8x256xi32>
      %177 = arith.shli %175, %176 : vector<8x256xi32>
      %178 = arith.xori %175, %177 : vector<8x256xi32>
      %c9_i32_55 = arith.constant 9 : i32
      %179 = vector.broadcast %c9_i32_55 : i32 to vector<8x256xi32>
      %180 = arith.shrui %178, %179 : vector<8x256xi32>
      %c1065353216_i32_56 = arith.constant 1065353216 : i32
      %181 = vector.broadcast %c1065353216_i32_56 : i32 to vector<8x256xi32>
      %182 = arith.ori %180, %181 : vector<8x256xi32>
      %183 = tpu.bitcast %182 : vector<8x256xi32> -> vector<8x256xf32>
      %cst_57 = arith.constant 2.000000e+00 : f32
      %184 = vector.broadcast %cst_57 : f32 to vector<8x256xf32>
      %185 = arith.subf %184, %183 : vector<8x256xf32>
      %186 = arith.mulf %164, %185 : vector<8x256xf32>
      %187 = arith.cmpf ogt, %186, %52 : vector<8x256xf32>
      %cst_58 = arith.constant 1.000000e+00 : f32
      %cst_59 = arith.constant 0.000000e+00 : f32
      %188 = vector.broadcast %cst_58 : f32 to vector<8x256xf32>
      %189 = vector.broadcast %cst_59 : f32 to vector<8x256xf32>
      %190 = arith.select %187, %188, %189 : vector<8x256xi1>, vector<8x256xf32>
      %191 = arith.addf %169, %190 : vector<8x256xf32>
      %c13_i32_60 = arith.constant 13 : i32
      %192 = vector.broadcast %c13_i32_60 : i32 to vector<8x256xi32>
      %193 = arith.shli %178, %192 : vector<8x256xi32>
      %194 = arith.xori %178, %193 : vector<8x256xi32>
      %c17_i32_61 = arith.constant 17 : i32
      %195 = vector.broadcast %c17_i32_61 : i32 to vector<8x256xi32>
      %196 = arith.shrui %194, %195 : vector<8x256xi32>
      %197 = arith.xori %194, %196 : vector<8x256xi32>
      %c5_i32_62 = arith.constant 5 : i32
      %198 = vector.broadcast %c5_i32_62 : i32 to vector<8x256xi32>
      %199 = arith.shli %197, %198 : vector<8x256xi32>
      %200 = arith.xori %197, %199 : vector<8x256xi32>
      %c9_i32_63 = arith.constant 9 : i32
      %201 = vector.broadcast %c9_i32_63 : i32 to vector<8x256xi32>
      %202 = arith.shrui %200, %201 : vector<8x256xi32>
      %c1065353216_i32_64 = arith.constant 1065353216 : i32
      %203 = vector.broadcast %c1065353216_i32_64 : i32 to vector<8x256xi32>
      %204 = arith.ori %202, %203 : vector<8x256xi32>
      %205 = tpu.bitcast %204 : vector<8x256xi32> -> vector<8x256xf32>
      %cst_65 = arith.constant 2.000000e+00 : f32
      %206 = vector.broadcast %cst_65 : f32 to vector<8x256xf32>
      %207 = arith.subf %206, %205 : vector<8x256xf32>
      %208 = arith.mulf %186, %207 : vector<8x256xf32>
      %209 = arith.cmpf ogt, %208, %52 : vector<8x256xf32>
      %cst_66 = arith.constant 1.000000e+00 : f32
      %cst_67 = arith.constant 0.000000e+00 : f32
      %210 = vector.broadcast %cst_66 : f32 to vector<8x256xf32>
      %211 = vector.broadcast %cst_67 : f32 to vector<8x256xf32>
      %212 = arith.select %209, %210, %211 : vector<8x256xi1>, vector<8x256xf32>
      %213 = arith.addf %191, %212 : vector<8x256xf32>
      %c13_i32_68 = arith.constant 13 : i32
      %214 = vector.broadcast %c13_i32_68 : i32 to vector<8x256xi32>
      %215 = arith.shli %200, %214 : vector<8x256xi32>
      %216 = arith.xori %200, %215 : vector<8x256xi32>
      %c17_i32_69 = arith.constant 17 : i32
      %217 = vector.broadcast %c17_i32_69 : i32 to vector<8x256xi32>
      %218 = arith.shrui %216, %217 : vector<8x256xi32>
      %219 = arith.xori %216, %218 : vector<8x256xi32>
      %c5_i32_70 = arith.constant 5 : i32
      %220 = vector.broadcast %c5_i32_70 : i32 to vector<8x256xi32>
      %221 = arith.shli %219, %220 : vector<8x256xi32>
      %222 = arith.xori %219, %221 : vector<8x256xi32>
      %c9_i32_71 = arith.constant 9 : i32
      %223 = vector.broadcast %c9_i32_71 : i32 to vector<8x256xi32>
      %224 = arith.shrui %222, %223 : vector<8x256xi32>
      %c1065353216_i32_72 = arith.constant 1065353216 : i32
      %225 = vector.broadcast %c1065353216_i32_72 : i32 to vector<8x256xi32>
      %226 = arith.ori %224, %225 : vector<8x256xi32>
      %227 = tpu.bitcast %226 : vector<8x256xi32> -> vector<8x256xf32>
      %cst_73 = arith.constant 2.000000e+00 : f32
      %228 = vector.broadcast %cst_73 : f32 to vector<8x256xf32>
      %229 = arith.subf %228, %227 : vector<8x256xf32>
      %230 = arith.mulf %208, %229 : vector<8x256xf32>
      %231 = arith.cmpf ogt, %230, %52 : vector<8x256xf32>
      %cst_74 = arith.constant 1.000000e+00 : f32
      %cst_75 = arith.constant 0.000000e+00 : f32
      %232 = vector.broadcast %cst_74 : f32 to vector<8x256xf32>
      %233 = vector.broadcast %cst_75 : f32 to vector<8x256xf32>
      %234 = arith.select %231, %232, %233 : vector<8x256xi1>, vector<8x256xf32>
      %235 = arith.addf %213, %234 : vector<8x256xf32>
      %c13_i32_76 = arith.constant 13 : i32
      %236 = vector.broadcast %c13_i32_76 : i32 to vector<8x256xi32>
      %237 = arith.shli %222, %236 : vector<8x256xi32>
      %238 = arith.xori %222, %237 : vector<8x256xi32>
      %c17_i32_77 = arith.constant 17 : i32
      %239 = vector.broadcast %c17_i32_77 : i32 to vector<8x256xi32>
      %240 = arith.shrui %238, %239 : vector<8x256xi32>
      %241 = arith.xori %238, %240 : vector<8x256xi32>
      %c5_i32_78 = arith.constant 5 : i32
      %242 = vector.broadcast %c5_i32_78 : i32 to vector<8x256xi32>
      %243 = arith.shli %241, %242 : vector<8x256xi32>
      %244 = arith.xori %241, %243 : vector<8x256xi32>
      %c9_i32_79 = arith.constant 9 : i32
      %245 = vector.broadcast %c9_i32_79 : i32 to vector<8x256xi32>
      %246 = arith.shrui %244, %245 : vector<8x256xi32>
      %c1065353216_i32_80 = arith.constant 1065353216 : i32
      %247 = vector.broadcast %c1065353216_i32_80 : i32 to vector<8x256xi32>
      %248 = arith.ori %246, %247 : vector<8x256xi32>
      %249 = tpu.bitcast %248 : vector<8x256xi32> -> vector<8x256xf32>
      %cst_81 = arith.constant 2.000000e+00 : f32
      %250 = vector.broadcast %cst_81 : f32 to vector<8x256xf32>
      %251 = arith.subf %250, %249 : vector<8x256xf32>
      %252 = arith.mulf %230, %251 : vector<8x256xf32>
      %253 = arith.cmpf ogt, %252, %52 : vector<8x256xf32>
      %cst_82 = arith.constant 1.000000e+00 : f32
      %cst_83 = arith.constant 0.000000e+00 : f32
      %254 = vector.broadcast %cst_82 : f32 to vector<8x256xf32>
      %255 = vector.broadcast %cst_83 : f32 to vector<8x256xf32>
      %256 = arith.select %253, %254, %255 : vector<8x256xi1>, vector<8x256xf32>
      %257 = arith.addf %235, %256 : vector<8x256xf32>
      %c8_i32_84 = arith.constant 8 : i32
      %258 = arith.addi %arg8, %c8_i32_84 : i32
      scf.yield %252, %257, %244, %258 : vector<8x256xf32>, vector<8x256xf32>, vector<8x256xi32>, i32
    }
    %cst_21 = arith.constant 1.250000e-01 : f32
    %78 = vector.broadcast %cst_21 : f32 to vector<8x256xf32>
    %79 = arith.mulf %77#1, %78 : vector<8x256xf32>
    %80 = arith.index_cast %15 : i32 to index
    %c0_22 = arith.constant 0 : index
    %81 = vector.load %arg4[%80, %c0_22] : memref<8x256xf32, #tpu.memory_space<vmem>>, vector<8x256xf32>
    tpu.vector_store %arg4[%80, %c0_22], %79 {strides = array<i32>} : memref<8x256xf32, #tpu.memory_space<vmem>>, vector<8x256xf32>,
    %c1_i32_23 = arith.constant 1 : i32
    return
  }
  func.func @transform_0(%arg0: i32, %arg1: memref<1xi32, #tpu.memory_space<smem>>) -> (i32, i32) {
    %c0_i32 = arith.constant 0 : i32
    %c0_i32_0 = arith.constant 0 : i32
    return %arg0, %c0_i32 : i32, i32
  }
  func.func @transform_1(%arg0: i32, %arg1: memref<1xi32, #tpu.memory_space<smem>>) -> (i32, i32) {
    %c0_i32 = arith.constant 0 : i32
    %c0_i32_0 = arith.constant 0 : i32
    %c0_i32_1 = arith.constant 0 : i32
    return %c0_i32, %c0_i32_0 : i32, i32
  }
  func.func @transform_2(%arg0: i32, %arg1: memref<1xi32, #tpu.memory_space<smem>>) -> (i32, i32) {
    %c0_i32 = arith.constant 0 : i32
    %c0_i32_0 = arith.constant 0 : i32
    return %arg0, %c0_i32 : i32, i32
  }
}

</mosaic_0001>

<llo_original>
// kernel: tpu_custom_call.1
$region0: #{tpu_custom_call.1}
  #allocation0 [shape = 'u32[]', space=smem, size = 0x4, offset = 0x4, fixed_abs, tag = 'smem constant byte address 0x4 - core index']
  #allocation1 [shape = 'u32[144,128]{1,0:T(1,128)}', space=vmem, size = 0x12000, scoped, tag = 'internal scratch']
  #allocation2 [shape = 's32[1]{0}', space=sflag, size = 0x4, scoped, tag = 'scoped memory for tpu_custom_call.1']
  #allocation3 [shape = 's32[1]{0:T(128)S(6)}', space=smem, size = 0x200, scoped, tag = 'prefetched SMEM operand 0']
  %s0 = inlined_call_operand.<no memory space> [shape: s32[1], index: 0, kind: input, shape index: {}]
  %s1 = inlined_call_operand.hbm [shape: f32[8,256], index: 1, kind: input, shape index: {}]
  %s2 = inlined_call_operand.hbm [shape: f32[2,256], index: 2, kind: input, shape index: {}]
  %s3 = inlined_call_operand.hbm [shape: f32[8,256], index: 3, kind: output, shape index: {}]
  %s4 = sld [smem:[#allocation0]]
  $region33: #{tpu_custom_call.1} parent=0
    _
  %s6 = ssub.s32 1, %s4
  %s7 = scalar_select 0, %s6, %s4
  %8 = sst [smem:[#allocation3]] %s0
  $region1: #{tpu_custom_call.1} parent=0
    #allocation4 [shape = 'u8[8192]{0}', space=vmem, size = 0x2000, scoped, tag = 'input window, operand 1, single buffered']
    #allocation5 [shape = 's32[1]{0}', space=sflag, size = 0x4, scoped, tag = 'scoped memory for tpu_custom_call.1']
    #allocation6 [shape = 's32[1]{0}', space=sflag, size = 0x4, scoped, tag = 'scoped memory for tpu_custom_call.1']
    #allocation7 [shape = 'u8[2048]{0}', space=vmem, size = 0x800, scoped, tag = 'input window, operand 2, single buffered']
    #allocation8 [shape = 's32[1]{0}', space=sflag, size = 0x4, scoped, tag = 'scoped memory for tpu_custom_call.1']
    #allocation9 [shape = 'u8[8192]{0}', space=vmem, size = 0x2000, scoped, tag = 'output window, operand 0, single buffered']
    %9 = vsyncpa [#allocation5], 0
    %10 = vsyncpa [#allocation8], 0
    %11 = vsyncpa [#allocation6], 0
    // Predicated region
    $region2: #{tpu_custom_call.1} parent=1 // pred_check
      _
    $region3: #{tpu_custom_call.1} parent=1 // pred_check_branch
      %13 = sbr.rel (0) target = $region5
    $region4: #{tpu_custom_call.1} parent=1 // pred_region
      %s15 = ssub.s32 256, 256
      %16 = vsyncadd [#allocation5], %s15
      %s18 = sshll.u32 [#allocation4], 4
      %s19 = int_to_ptr.vmem [resolvable:$true] %s18
      %21 = dma.hbm_to_vmem [thread:$0]  %s1, 256, %s19, [#allocation5]
    $region5: #{tpu_custom_call.1} parent=1 // pred_fallthru
      _
    // Predicated region
    $region6: #{tpu_custom_call.1} parent=1 // pred_check
      _
    $region7: #{tpu_custom_call.1} parent=1 // pred_check_branch
      %23 = sbr.rel (0) target = $region9
    $region8: #{tpu_custom_call.1} parent=1 // pred_region
      %s25 = ssub.s32 64, 64
      %26 = vsyncadd [#allocation8], %s25
      %s28 = sshll.u32 [#allocation7], 4
      %s29 = int_to_ptr.vmem [resolvable:$true] %s28
      %31 = dma.hbm_to_vmem [thread:$0]  %s2, 64, %s29, [#allocation8]
    $region9: #{tpu_custom_call.1} parent=1 // pred_fallthru
      _
    // Predicated region
    $region10: #{tpu_custom_call.1} parent=1 // pred_check
      _
    $region11: #{tpu_custom_call.1} parent=1 // pred_check_branch
      %33 = sbr.rel (0) target = $region13
    $region12: #{tpu_custom_call.1} parent=1 // pred_region
      %34 = dma.done [#allocation5], 256
    $region13: #{tpu_custom_call.1} parent=1 // pred_fallthru
      _
    // Predicated region
    $region14: #{tpu_custom_call.1} parent=1 // pred_check
      _
    $region15: #{tpu_custom_call.1} parent=1 // pred_check_branch
      %36 = sbr.rel (0) target = $region17
    $region16: #{tpu_custom_call.1} parent=1 // pred_region
      %37 = dma.done [#allocation8], 64
    $region17: #{tpu_custom_call.1} parent=1 // pred_fallthru
      _
    %v38 = vld [vmem:[#allocation7] ss:$2 sm:$0x3]
    %v40 = vlaneseq
    %v41 = vshrl.u32 %v40, 7
    %v42 = vsub.s32 0, %v41
    %v43 = vrot.slane %v38, %v42
    %v44 = vlaneseq
    %v45 = vshrl.u32 %v44, 7
    %v46 = vsub.s32 1, %v45
    %v47 = vrot.slane %v38, %v46
    %s50 = scalar_lea.vmem [#allocation7], 1
    %v51 = vld [vmem:[%s50] ss:$2 sm:$0x3]
    %v53 = vlaneseq
    %v54 = vshrl.u32 %v53, 7
    %v55 = vsub.s32 0, %v54
    %v56 = vrot.slane %v51, %v55
    %v57 = vlaneseq
    %v58 = vshrl.u32 %v57, 7
    %v59 = vsub.s32 1, %v58
    %v60 = vrot.slane %v51, %v59
    %v63 = vlaneseq
    %v64 = vshrl.u32 %v63, 7
    %v65 = vlaneseq
    %v66 = vand.u32 %v65, 127
    %v67 = vadd.s32 %v66, 128
    %v68 = vmul.u32 %v64, 256
    %v69 = vadd.s32 %v68, %v66
    %v70 = vadd.s32 %v68, %v67
    %s71 = sld [smem:[#allocation3]]
    %s72 = smul.u32 %s71, 1000000007
    %s73 = smul.u32 0, 8
    %s74 = smul.u32 0, 2
    %s75 = smul.addr %s74, 8
    %s76 = scalar_lea.vmem [#allocation4], %s75
    %v77 = vld [vmem:[%s76] sm:$0xff]
    %v78 = vld [vmem:[%s76 + $0x8] sm:$0xff]
    %v79 = vmax.f32 %v77, 0.0
    %v80 = vmax.f32 %v78, 0.0
    %v81 = vmin.f32 %v79, 1.0
    %v82 = vmin.f32 %v80, 1.0
    %85 = vrot.lane.b32.xlu0 %v81, 16
    %v86 = vpop.permute.xlu0 %85
    %87 = vrot.lane.b32.xlu0 %v82, 16
    %v88 = vpop.permute.xlu0 %87
    %vm89 = vcmask 130048
    %v90 = vsel %vm89, %v86, %v88
    %v93 = vsel %vm89, 0.0, %v86
    %v94 = vmul.f32 %v81, 2.0
    %v95 = vmul.f32 %v82, 2.0
    %v96 = vadd.f32 %v93, %v94
    %v97 = vadd.f32 %v90, %v95
    %98 = vrot.lane.b32.xlu0 %v81, 112
    %v99 = vpop.permute.xlu0 %98
    %100 = vrot.lane.b32.xlu0 %v82, 112
    %v101 = vpop.permute.xlu0 %100
    %vm102 = vcmask 916480
    %v103 = vsel %vm102, %v99, %v101
    %v106 = vsel %vm102, %v101, 0.0
    %v107 = vadd.f32 %v96, %v103
    %v108 = vadd.f32 %v97, %v106
    %v109 = vmul.f32 %v107, 0.25
    %v110 = vmul.f32 %v108, 0.25
    %113 = vrot.lane.b32.xlu0 %v109, 1
    %v114 = vpop.permute.xlu0 %113
    %115 = vrot.lane.b32.xlu0 %v110, 1
    %v116 = vpop.permute.xlu0 %115
    %vm117 = vcmask 7168
    %v118 = vsel %vm117, %v114, %v116
    %v121 = vsel %vm117, 0.0, %v114
    %v122 = vmul.f32 %v43, %v121
    %v123 = vmul.f32 %v47, %v118
    %v124 = vmul.f32 %v109, 2.0
    %v125 = vmul.f32 %v110, 2.0
    %v126 = vadd.f32 %v122, %v124
    %v127 = vadd.f32 %v123, %v125
    %128 = vrot.lane.b32.xlu0 %v109, 127
    %v129 = vpop.permute.xlu0 %128
    %130 = vrot.lane.b32.xlu0 %v110, 127
    %v131 = vpop.permute.xlu0 %130
    %vm132 = vcmask 1039360
    %v133 = vsel %vm132, %v129, %v131
    %v136 = vsel %vm132, %v131, 0.0
    %v137 = vmul.f32 %v56, %v133
    %v138 = vmul.f32 %v60, %v136
    %v139 = vadd.f32 %v126, %v137
    %v140 = vadd.f32 %v127, %v138
    %v141 = vmul.f32 %v139, 0.25
    %v142 = vmul.f32 %v140, 0.25
    %v143 = vmul.f32 %v141, 8.0
    %v144 = vmul.f32 %v142, 8.0
    %v145 = vsub.f32 0.0, %v143
    %v146 = vsub.f32 0.0, %v144
    %v147 = vmul.f32 %v145, 1.442695
    %v148 = vpow.pop %v147
    %v149 = vmul.f32 %v146, 1.442695
    %v150 = vpow.pop %v149
    %s151 = sadd.s32 %s73, 0
    %s152 = smul.u32 %s151, 256
    %v153 = vstv %s152
    %v154 = vadd.s32 %v69, %v153
    %v155 = vadd.s32 %v70, %v153
    %v156 = vstv %s72
    %v157 = vadd.s32 %v154, %v156
    %v158 = vadd.s32 %v155, %v156
    %v159 = vshrl.u32 %v157, 16
    %v160 = vshrl.u32 %v158, 16
    %v161 = vxor.u32 %v157, %v159
    %v162 = vxor.u32 %v158, %v160
    %v163 = vmul.u32 %v161, 2246822507
    %v164 = vmul.u32 %v162, 2246822507
    %v165 = vshrl.u32 %v163, 13
    %v166 = vshrl.u32 %v164, 13
    %v167 = vxor.u32 %v163, %v165
    %v168 = vxor.u32 %v164, %v166
    %v169 = vmul.u32 %v167, 3266489909
    %v170 = vmul.u32 %v168, 3266489909
    %v171 = vshrl.u32 %v169, 16
    %v172 = vshrl.u32 %v170, 16
    %v173 = vxor.u32 %v169, %v171
    %v174 = vxor.u32 %v170, %v172
    %v175 = vor.u32 %v173, 1
    %v176 = vor.u32 %v174, 1
    // While loop
    $region18: #{tpu_custom_call.1} parent=1 // loop_pre_header
      _
    $region19: #{tpu_custom_call.1} parent=1 // loop_header
      %v178 = vphi 1.0, %v421
      %v179 = vphi 1.0, %v422
      %v180 = vphi 0.0, %v427
      %v181 = vphi 0.0, %v428
      %v182 = vphi %v175, %v411
      %v183 = vphi %v176, %v412
      %s184 = sphi 0, %s429
      %vm185 = vcmp.gt.f32.partialorder %v178, %v148
      %vm186 = vcmp.gt.f32.partialorder %v179, %v150
      %v187 = vsel %vm185, 1.0, 0.0
      %v188 = vsel %vm186, 1.0, 0.0
      %v189 = vmax.f32 %v187, %v188
      %190 = vmax.xlane.f32.xlu0 %v189
      %v191 = vpop.xlane.xlu0 %190
      %v192 = vrot.slane %v191, 4
      %v193 = vmax.f32 %v191, %v192
      %v194 = vrot.slane %v193, 2
      %v195 = vmax.f32 %v193, %v194
      %v196 = vrot.slane %v195, 1
      %v197 = vmax.f32 %v195, %v196
      %s198 = vtos %v197
      %p199 = scmp.lt.s32.totalorder %s184, 37
      %p200 = scmp.gt.f32.partialorder %s198, 0.0
      %p201 = pnand %p199, %p200
      %p202 = pneg %p201
    $region20: #{tpu_custom_call.1} parent=1 // loop_header_branch
      %204 = sbr.rel (%p201) target = $region24
    $region21: #{tpu_custom_call.1} parent=1 // loop_body
      %v205 = vshll.u32 %v182, 13
      %v206 = vshll.u32 %v183, 13
      %v207 = vxor.u32 %v182, %v205
      %v208 = vxor.u32 %v183, %v206
      %v209 = vshrl.u32 %v207, 17
      %v210 = vshrl.u32 %v208, 17
      %v211 = vxor.u32 %v207, %v209
      %v212 = vxor.u32 %v208, %v210
      %v213 = vshll.u32 %v211, 5
      %v214 = vshll.u32 %v212, 5
      %v215 = vxor.u32 %v211, %v213
      %v216 = vxor.u32 %v212, %v214
      %v217 = vshrl.u32 %v215, 9
      %v218 = vshrl.u32 %v216, 9
      %v219 = vor.u32 %v217, 1065353216
      %v220 = vor.u32 %v218, 1065353216
      %v223 = vsub.f32 2.0, %v219
      %v224 = vsub.f32 2.0, %v220
      %v225 = vmul.f32 %v178, %v223
      %v226 = vmul.f32 %v179, %v224
      %vm227 = vcmp.gt.f32.partialorder %v225, %v148
      %vm228 = vcmp.gt.f32.partialorder %v226, %v150
      %v229 = vsel %vm227, 1.0, 0.0
      %v230 = vsel %vm228, 1.0, 0.0
      %v231 = vadd.f32 %v180, %v229
      %v232 = vadd.f32 %v181, %v230
      %v233 = vshll.u32 %v215, 13
      %v234 = vshll.u32 %v216, 13
      %v235 = vxor.u32 %v215, %v233
      %v236 = vxor.u32 %v216, %v234
      %v237 = vshrl.u32 %v235, 17
      %v238 = vshrl.u32 %v236, 17
      %v239 = vxor.u32 %v235, %v237
      %v240 = vxor.u32 %v236, %v238
      %v241 = vshll.u32 %v239, 5
      %v242 = vshll.u32 %v240, 5
      %v243 = vxor.u32 %v239, %v241
      %v244 = vxor.u32 %v240, %v242
      %v245 = vshrl.u32 %v243, 9
      %v246 = vshrl.u32 %v244, 9
      %v247 = vor.u32 %v245, 1065353216
      %v248 = vor.u32 %v246, 1065353216
      %v251 = vsub.f32 2.0, %v247
      %v252 = vsub.f32 2.0, %v248
      %v253 = vmul.f32 %v225, %v251
      %v254 = vmul.f32 %v226, %v252
      %vm255 = vcmp.gt.f32.partialorder %v253, %v148
      %vm256 = vcmp.gt.f32.partialorder %v254, %v150
      %v257 = vsel %vm255, 1.0, 0.0
      %v258 = vsel %vm256, 1.0, 0.0
      %v259 = vadd.f32 %v231, %v257
      %v260 = vadd.f32 %v232, %v258
      %v261 = vshll.u32 %v243, 13
      %v262 = vshll.u32 %v244, 13
      %v263 = vxor.u32 %v243, %v261
      %v264 = vxor.u32 %v244, %v262
      %v265 = vshrl.u32 %v263, 17
      %v266 = vshrl.u32 %v264, 17
      %v267 = vxor.u32 %v263, %v265
      %v268 = vxor.u32 %v264, %v266
      %v269 = vshll.u32 %v267, 5
      %v270 = vshll.u32 %v268, 5
      %v271 = vxor.u32 %v267, %v269
      %v272 = vxor.u32 %v268, %v270
      %v273 = vshrl.u32 %v271, 9
      %v274 = vshrl.u32 %v272, 9
      %v275 = vor.u32 %v273, 1065353216
      %v276 = vor.u32 %v274, 1065353216
      %v279 = vsub.f32 2.0, %v275
      %v280 = vsub.f32 2.0, %v276
      %v281 = vmul.f32 %v253, %v279
      %v282 = vmul.f32 %v254, %v280
      %vm283 = vcmp.gt.f32.partialorder %v281, %v148
      %vm284 = vcmp.gt.f32.partialorder %v282, %v150
      %v285 = vsel %vm283, 1.0, 0.0
      %v286 = vsel %vm284, 1.0, 0.0
      %v287 = vadd.f32 %v259, %v285
      %v288 = vadd.f32 %v260, %v286
      %v289 = vshll.u32 %v271, 13
      %v290 = vshll.u32 %v272, 13
      %v291 = vxor.u32 %v271, %v289
      %v292 = vxor.u32 %v272, %v290
      %v293 = vshrl.u32 %v291, 17
      %v294 = vshrl.u32 %v292, 17
      %v295 = vxor.u32 %v291, %v293
      %v296 = vxor.u32 %v292, %v294
      %v297 = vshll.u32 %v295, 5
      %v298 = vshll.u32 %v296, 5
      %v299 = vxor.u32 %v295, %v297
      %v300 = vxor.u32 %v296, %v298
      %v301 = vshrl.u32 %v299, 9
      %v302 = vshrl.u32 %v300, 9
      %v303 = vor.u32 %v301, 1065353216
      %v304 = vor.u32 %v302, 1065353216
      %v307 = vsub.f32 2.0, %v303
      %v308 = vsub.f32 2.0, %v304
      %v309 = vmul.f32 %v281, %v307
      %v310 = vmul.f32 %v282, %v308
      %vm311 = vcmp.gt.f32.partialorder %v309, %v148
      %vm312 = vcmp.gt.f32.partialorder %v310, %v150
      %v313 = vsel %vm311, 1.0, 0.0
      %v314 = vsel %vm312, 1.0, 0.0
      %v315 = vadd.f32 %v287, %v313
      %v316 = vadd.f32 %v288, %v314
      %v317 = vshll.u32 %v299, 13
      %v318 = vshll.u32 %v300, 13
      %v319 = vxor.u32 %v299, %v317
      %v320 = vxor.u32 %v300, %v318
      %v321 = vshrl.u32 %v319, 17
      %v322 = vshrl.u32 %v320, 17
      %v323 = vxor.u32 %v319, %v321
      %v324 = vxor.u32 %v320, %v322
      %v325 = vshll.u32 %v323, 5
      %v326 = vshll.u32 %v324, 5
      %v327 = vxor.u32 %v323, %v325
      %v328 = vxor.u32 %v324, %v326
      %v329 = vshrl.u32 %v327, 9
      %v330 = vshrl.u32 %v328, 9
      %v331 = vor.u32 %v329, 1065353216
      %v332 = vor.u32 %v330, 1065353216
      %v335 = vsub.f32 2.0, %v331
      %v336 = vsub.f32 2.0, %v332
      %v337 = vmul.f32 %v309, %v335
      %v338 = vmul.f32 %v310, %v336
      %vm339 = vcmp.gt.f32.partialorder %v337, %v148
      %vm340 = vcmp.gt.f32.partialorder %v338, %v150
      %v341 = vsel %vm339, 1.0, 0.0
      %v342 = vsel %vm340, 1.0, 0.0
      %v343 = vadd.f32 %v315, %v341
      %v344 = vadd.f32 %v316, %v342
      %v345 = vshll.u32 %v327, 13
      %v346 = vshll.u32 %v328, 13
      %v347 = vxor.u32 %v327, %v345
      %v348 = vxor.u32 %v328, %v346
      %v349 = vshrl.u32 %v347, 17
      %v350 = vshrl.u32 %v348, 17
      %v351 = vxor.u32 %v347, %v349
      %v352 = vxor.u32 %v348, %v350
      %v353 = vshll.u32 %v351, 5
      %v354 = vshll.u32 %v352, 5
      %v355 = vxor.u32 %v351, %v353
      %v356 = vxor.u32 %v352, %v354
      %v357 = vshrl.u32 %v355, 9
      %v358 = vshrl.u32 %v356, 9
      %v359 = vor.u32 %v357, 1065353216
      %v360 = vor.u32 %v358, 1065353216
      %v363 = vsub.f32 2.0, %v359
      %v364 = vsub.f32 2.0, %v360
      %v365 = vmul.f32 %v337, %v363
      %v366 = vmul.f32 %v338, %v364
      %vm367 = vcmp.gt.f32.partialorder %v365, %v148
      %vm368 = vcmp.gt.f32.partialorder %v366, %v150
      %v369 = vsel %vm367, 1.0, 0.0
      %v370 = vsel %vm368, 1.0, 0.0
      %v371 = vadd.f32 %v343, %v369
      %v372 = vadd.f32 %v344, %v370
      %v373 = vshll.u32 %v355, 13
      %v374 = vshll.u32 %v356, 13
      %v375 = vxor.u32 %v355, %v373
      %v376 = vxor.u32 %v356, %v374
      %v377 = vshrl.u32 %v375, 17
      %v378 = vshrl.u32 %v376, 17
      %v379 = vxor.u32 %v375, %v377
      %v380 = vxor.u32 %v376, %v378
      %v381 = vshll.u32 %v379, 5
      %v382 = vshll.u32 %v380, 5
      %v383 = vxor.u32 %v379, %v381
      %v384 = vxor.u32 %v380, %v382
      %v385 = vshrl.u32 %v383, 9
      %v386 = vshrl.u32 %v384, 9
      %v387 = vor.u32 %v385, 1065353216
      %v388 = vor.u32 %v386, 1065353216
      %v391 = vsub.f32 2.0, %v387
      %v392 = vsub.f32 2.0, %v388
      %v393 = vmul.f32 %v365, %v391
      %v394 = vmul.f32 %v366, %v392
      %vm395 = vcmp.gt.f32.partialorder %v393, %v148
      %vm396 = vcmp.gt.f32.partialorder %v394, %v150
      %v397 = vsel %vm395, 1.0, 0.0
      %v398 = vsel %vm396, 1.0, 0.0
      %v399 = vadd.f32 %v371, %v397
      %v400 = vadd.f32 %v372, %v398
      %v401 = vshll.u32 %v383, 13
      %v402 = vshll.u32 %v384, 13
      %v403 = vxor.u32 %v383, %v401
      %v404 = vxor.u32 %v384, %v402
      %v405 = vshrl.u32 %v403, 17
      %v406 = vshrl.u32 %v404, 17
      %v407 = vxor.u32 %v403, %v405
      %v408 = vxor.u32 %v404, %v406
      %v409 = vshll.u32 %v407, 5
      %v410 = vshll.u32 %v408, 5
      %v411 = vxor.u32 %v407, %v409
      %v412 = vxor.u32 %v408, %v410
      %v413 = vshrl.u32 %v411, 9
      %v414 = vshrl.u32 %v412, 9
      %v415 = vor.u32 %v413, 1065353216
      %v416 = vor.u32 %v414, 1065353216
      %v419 = vsub.f32 2.0, %v415
      %v420 = vsub.f32 2.0, %v416
      %v421 = vmul.f32 %v393, %v419
      %v422 = vmul.f32 %v394, %v420
      %vm423 = vcmp.gt.f32.partialorder %v421, %v148
      %vm424 = vcmp.gt.f32.partialorder %v422, %v150
      %v425 = vsel %vm423, 1.0, 0.0
      %v426 = vsel %vm424, 1.0, 0.0
      %v427 = vadd.f32 %v399, %v425
      %v428 = vadd.f32 %v400, %v426
      %s429 = sadd.s32 %s184, 8
    $region22: #{tpu_custom_call.1} parent=1 // loop_footer
      _
    $region23: #{tpu_custom_call.1} parent=1 // loop_footer_branch
      %177 = sbr.rel target = $region19
    $region24: #{tpu_custom_call.1} parent=1 // loop_exit
      _
    %v430 = vmul.f32 %v180, 0.125
    %v431 = vmul.f32 %v181, 0.125
    %s432 = smul.addr %s74, 8
    %s433 = scalar_lea.vmem [#allocation9], %s432
    %434 = vst [vmem:[%s433] sm:$0xff] %v430
    %435 = vst [vmem:[%s433 + $0x8] sm:$0xff] %v431
    // Predicated region
    $region25: #{tpu_custom_call.1} parent=1 // pred_check
      _
    $region26: #{tpu_custom_call.1} parent=1 // pred_check_branch
      %437 = sbr.rel (0) target = $region28
    $region27: #{tpu_custom_call.1} parent=1 // pred_region
      %s439 = ssub.s32 256, 256
      %440 = vsyncadd [#allocation6], %s439
      %s442 = sshll.u32 [#allocation9], 4
      %s443 = int_to_ptr.vmem [resolvable:$true] %s442
      %445 = dma.vmem_to_hbm [thread:$0]  %s443, 256, %s3, [#allocation6]
    $region28: #{tpu_custom_call.1} parent=1 // pred_fallthru
      _
    // Predicated region
    $region29: #{tpu_custom_call.1} parent=1 // pred_check
      _
    $region30: #{tpu_custom_call.1} parent=1 // pred_check_branch
      %447 = sbr.rel (0) target = $region32
    $region31: #{tpu_custom_call.1} parent=1 // pred_region
      %448 = dma.done [#allocation6], 256
    $region32: #{tpu_custom_call.1} parent=1 // pred_fallthru
      _
    %449 = vsyncpa [#allocation5], 1
    %450 = vsyncpa [#allocation8], 1
    %451 = vsyncpa [#allocation6], 1

</llo_original>
